<compile_context>
chip_gen: v6e
topology: v6e:2x2x1
jax: 0.10.0
libtpu: 0.0.40
codegen_flags: <defaults>
</compile_context>

<pallas_src>
import jax
import jax.numpy as jnp
from jax.experimental import pallas as pl
from jax.experimental.pallas import tpu as pltpu

_IN = 2      # linear1 in_features
_HID = 5     # linear1 out_features / linear2 in_features
# Packed-parameter layout (row-major): w1[5,2] -> [0,10), b1[5] -> [10,15),
# w2[1,5] -> [15,20), b2[1] -> [20]
_OFF_B1 = _HID * _IN          # 10
_OFF_W2 = _OFF_B1 + _HID      # 15
_OFF_B2 = _OFF_W2 + _HID      # 20
_NPARAMS = _OFF_B2 + 1        # 21


def _mlp_kernel(params_ref, x_ref, o_ref):
    """Pure-VPU MLP in transposed (lane-dense) layout.

    params_ref : SMEM f32[21]   packed [w1, b1, w2, b2]
    x_ref      : VMEM f32[2, TB]   (batch on the lane axis)
    o_ref      : VMEM f32[1, TB]   (lane-dense output block)
    """
    x = x_ref[...]                      # [2, TB]
    x0 = x[0:1, :]                      # [1, TB]
    x1 = x[1:2, :]                      # [1, TB]

    # y starts as the broadcast of b2, then accumulates relu(h_j) * w2[0, j].
    y = jnp.zeros_like(x0) + params_ref[_OFF_B2]
    for j in range(_HID):               # fully unrolled: 5 hidden units
        h = (x0 * params_ref[_IN * j]
             + x1 * params_ref[_IN * j + 1]
             + params_ref[_OFF_B1 + j])
        y = y + jnp.maximum(h, 0.0) * params_ref[_OFF_W2 + j]

    o_ref[...] = y.astype(o_ref.dtype)


def simple_nonlinear_model(x, w1, b1, w2, b2, *, lane_tile=512):
    """Forward pass: linear2(relu(linear1(x))).

    x:  [B, 2] float32
    w1: [5, 2] float32 (PyTorch layout), b1: [5]
    w2: [1, 5] float32 (PyTorch layout), b2: [1]
    returns: [B, 1] float32
    """
    B = x.shape[0]

    # Single tiny SMEM operand with every parameter (21 floats).
    params = jnp.concatenate(
        [w1.reshape(-1), b1.reshape(-1), w2.reshape(-1), b2.reshape(-1)]
    ).astype(jnp.float32)
    assert params.shape == (_NPARAMS,)

    # Transposed input: batch on the lane axis.
    x_t = jnp.transpose(x).astype(jnp.float32)       # [2, B]

    # Lane tile: grid over the batch when it divides cleanly into 512-wide
    # (multiple-of-128) blocks, otherwise a single full-array block (always a
    # legal block shape since it equals the array dims).
    if B >= lane_tile and B % lane_tile == 0:
        tb = lane_tile
    else:
        tb = B
    grid = (B // tb,)

    out_t = pl.pallas_call(
        _mlp_kernel,
        out_shape=jax.ShapeDtypeStruct((1, B), jnp.float32),
        grid=grid,
        in_specs=[
            # Packed params live in SMEM for the whole kernel (no VMEM DMA).
            pl.BlockSpec(memory_space=pltpu.MemorySpace.SMEM),
            pl.BlockSpec((_IN, tb), lambda i: (0, i)),
        ],
        out_specs=pl.BlockSpec((1, tb), lambda i: (0, i)),
        compiler_params=pltpu.CompilerParams(
            dimension_semantics=("parallel",),   # batch blocks shard across TCs (v7x)
        ),
    )(params, x_t)

    # (1, B) -> (B, 1): same flat order, cheap reshape in the wrapper.
    return out_t.reshape(B, 1)


def _reference(x, w1, b1, w2, b2):
    h = jnp.maximum(x @ w1.T + b1, 0.0)
    return h @ w2.T + b2


if __name__ == "__main__":
    key = jax.random.PRNGKey(0)
    k_x, k_w1, k_b1, k_w2, k_b2, k_xl = jax.random.split(key, 6)

    # Deterministic parameter init mimicking nn.Linear's U(-1/sqrt(fan_in), ...).
    bound1 = 1.0 / jnp.sqrt(2.0)
    bound2 = 1.0 / jnp.sqrt(5.0)
    w1 = jax.random.uniform(k_w1, (5, 2), jnp.float32, -bound1, bound1)
    b1 = jax.random.uniform(k_b1, (5,), jnp.float32, -bound1, bound1)
    w2 = jax.random.uniform(k_w2, (1, 5), jnp.float32, -bound2, bound2)
    b2 = jax.random.uniform(k_b2, (1,), jnp.float32, -bound2, bound2)

    # Small batch: single full-array block.
    batch = 8
    x = jax.random.normal(k_x, (batch, 2), dtype=jnp.float32)
    y = simple_nonlinear_model(x, w1, b1, w2, b2)
    jax.block_until_ready(y)
    assert y.shape == (batch, 1)
    assert jnp.allclose(y, _reference(x, w1, b1, w2, b2), atol=1e-5, rtol=1e-5), \
        "mismatch vs reference (small batch)"

    # Larger batch: exercises the 1-D batch grid (two lane-dense 512 blocks).
    big = 1024
    x_big = jax.random.normal(k_xl, (big, 2), dtype=jnp.float32)
    y_big = simple_nonlinear_model(x_big, w1, b1, w2, b2)
    jax.block_until_ready(y_big)
    assert y_big.shape == (big, 1)
    assert jnp.allclose(y_big, _reference(x_big, w1, b1, w2, b2), atol=1e-5, rtol=1e-5), \
        "mismatch vs reference (large batch)"

    print("KERNEL_OK")
</pallas_src>

<mosaic_0001>
module attributes {stable_mosaic.version = 11 : i64} {
  func.func @_mlp_kernel(%arg0: i32, %arg1: memref<21xf32, #tpu.memory_space<smem>>, %arg2: memref<2x8xf32, #tpu.memory_space<vmem>>, %arg3: memref<1x8xf32, #tpu.memory_space<vmem>>) attributes {dimension_semantics = [#tpu.dimension_semantics<parallel>], iteration_bounds = array<i64: 1>, scalar_prefetch = 0 : i64, scratch_operands = 0 : i64, tpu.core_type = #tpu.core_type<tc>, window_params = [{transform_indices = @transform_0, window_bounds = array<i64: 21>}, {transform_indices = @transform_1, window_bounds = array<i64: 2, 8>}, {transform_indices = @transform_2, window_bounds = array<i64: 1, 8>}]} {
    %c0 = arith.constant 0 : index
    %c0_0 = arith.constant 0 : index
    %0 = vector.load %arg2[%c0, %c0_0] : memref<2x8xf32, #tpu.memory_space<vmem>>, vector<2x8xf32>
    %1 = vector.extract_strided_slice %0 {offsets = [0, 0], sizes = [1, 8], strides = [1, 1]} : vector<2x8xf32> to vector<1x8xf32>
    %2 = vector.extract_strided_slice %0 {offsets = [1, 0], sizes = [1, 8], strides = [1, 1]} : vector<2x8xf32> to vector<1x8xf32>
    %cst = arith.constant 0.000000e+00 : f32
    %3 = vector.broadcast %cst : f32 to vector<1x8xf32>
    %c20 = arith.constant 20 : index
    %4 = memref.load %arg1[%c20] : memref<21xf32, #tpu.memory_space<smem>>
    %5 = vector.broadcast %4 : f32 to vector<1x8xf32>
    %6 = arith.addf %3, %5 : vector<1x8xf32>
    %c0_1 = arith.constant 0 : index
    %7 = memref.load %arg1[%c0_1] : memref<21xf32, #tpu.memory_space<smem>>
    %8 = vector.broadcast %7 : f32 to vector<1x8xf32>
    %9 = arith.mulf %1, %8 : vector<1x8xf32>
    %c1 = arith.constant 1 : index
    %10 = memref.load %arg1[%c1] : memref<21xf32, #tpu.memory_space<smem>>
    %11 = vector.broadcast %10 : f32 to vector<1x8xf32>
    %12 = arith.mulf %2, %11 : vector<1x8xf32>
    %13 = arith.addf %9, %12 : vector<1x8xf32>
    %c10 = arith.constant 10 : index
    %14 = memref.load %arg1[%c10] : memref<21xf32, #tpu.memory_space<smem>>
    %15 = vector.broadcast %14 : f32 to vector<1x8xf32>
    %16 = arith.addf %13, %15 : vector<1x8xf32>
    %cst_2 = arith.constant 0.000000e+00 : f32
    %17 = vector.broadcast %cst_2 : f32 to vector<1x8xf32>
    %18 = arith.maximumf %16, %17 : vector<1x8xf32>
    %c15 = arith.constant 15 : index
    %19 = memref.load %arg1[%c15] : memref<21xf32, #tpu.memory_space<smem>>
    %20 = vector.broadcast %19 : f32 to vector<1x8xf32>
    %21 = arith.mulf %18, %20 : vector<1x8xf32>
    %22 = arith.addf %6, %21 : vector<1x8xf32>
    %c2 = arith.constant 2 : index
    %23 = memref.load %arg1[%c2] : memref<21xf32, #tpu.memory_space<smem>>
    %24 = vector.broadcast %23 : f32 to vector<1x8xf32>
    %25 = arith.mulf %1, %24 : vector<1x8xf32>
    %c3 = arith.constant 3 : index
    %26 = memref.load %arg1[%c3] : memref<21xf32, #tpu.memory_space<smem>>
    %27 = vector.broadcast %26 : f32 to vector<1x8xf32>
    %28 = arith.mulf %2, %27 : vector<1x8xf32>
    %29 = arith.addf %25, %28 : vector<1x8xf32>
    %c11 = arith.constant 11 : index
    %30 = memref.load %arg1[%c11] : memref<21xf32, #tpu.memory_space<smem>>
    %31 = vector.broadcast %30 : f32 to vector<1x8xf32>
    %32 = arith.addf %29, %31 : vector<1x8xf32>
    %cst_3 = arith.constant 0.000000e+00 : f32
    %33 = vector.broadcast %cst_3 : f32 to vector<1x8xf32>
    %34 = arith.maximumf %32, %33 : vector<1x8xf32>
    %c16 = arith.constant 16 : index
    %35 = memref.load %arg1[%c16] : memref<21xf32, #tpu.memory_space<smem>>
    %36 = vector.broadcast %35 : f32 to vector<1x8xf32>
    %37 = arith.mulf %34, %36 : vector<1x8xf32>
    %38 = arith.addf %22, %37 : vector<1x8xf32>
    %c4 = arith.constant 4 : index
    %39 = memref.load %arg1[%c4] : memref<21xf32, #tpu.memory_space<smem>>
    %40 = vector.broadcast %39 : f32 to vector<1x8xf32>
    %41 = arith.mulf %1, %40 : vector<1x8xf32>
    %c5 = arith.constant 5 : index
    %42 = memref.load %arg1[%c5] : memref<21xf32, #tpu.memory_space<smem>>
    %43 = vector.broadcast %42 : f32 to vector<1x8xf32>
    %44 = arith.mulf %2, %43 : vector<1x8xf32>
    %45 = arith.addf %41, %44 : vector<1x8xf32>
    %c12 = arith.constant 12 : index
    %46 = memref.load %arg1[%c12] : memref<21xf32, #tpu.memory_space<smem>>
    %47 = vector.broadcast %46 : f32 to vector<1x8xf32>
    %48 = arith.addf %45, %47 : vector<1x8xf32>
    %cst_4 = arith.constant 0.000000e+00 : f32
    %49 = vector.broadcast %cst_4 : f32 to vector<1x8xf32>
    %50 = arith.maximumf %48, %49 : vector<1x8xf32>
    %c17 = arith.constant 17 : index
    %51 = memref.load %arg1[%c17] : memref<21xf32, #tpu.memory_space<smem>>
    %52 = vector.broadcast %51 : f32 to vector<1x8xf32>
    %53 = arith.mulf %50, %52 : vector<1x8xf32>
    %54 = arith.addf %38, %53 : vector<1x8xf32>
    %c6 = arith.constant 6 : index
    %55 = memref.load %arg1[%c6] : memref<21xf32, #tpu.memory_space<smem>>
    %56 = vector.broadcast %55 : f32 to vector<1x8xf32>
    %57 = arith.mulf %1, %56 : vector<1x8xf32>
    %c7 = arith.constant 7 : index
    %58 = memref.load %arg1[%c7] : memref<21xf32, #tpu.memory_space<smem>>
    %59 = vector.broadcast %58 : f32 to vector<1x8xf32>
    %60 = arith.mulf %2, %59 : vector<1x8xf32>
    %61 = arith.addf %57, %60 : vector<1x8xf32>
    %c13 = arith.constant 13 : index
    %62 = memref.load %arg1[%c13] : memref<21xf32, #tpu.memory_space<smem>>
    %63 = vector.broadcast %62 : f32 to vector<1x8xf32>
    %64 = arith.addf %61, %63 : vector<1x8xf32>
    %cst_5 = arith.constant 0.000000e+00 : f32
    %65 = vector.broadcast %cst_5 : f32 to vector<1x8xf32>
    %66 = arith.maximumf %64, %65 : vector<1x8xf32>
    %c18 = arith.constant 18 : index
    %67 = memref.load %arg1[%c18] : memref<21xf32, #tpu.memory_space<smem>>
    %68 = vector.broadcast %67 : f32 to vector<1x8xf32>
    %69 = arith.mulf %66, %68 : vector<1x8xf32>
    %70 = arith.addf %54, %69 : vector<1x8xf32>
    %c8 = arith.constant 8 : index
    %71 = memref.load %arg1[%c8] : memref<21xf32, #tpu.memory_space<smem>>
    %72 = vector.broadcast %71 : f32 to vector<1x8xf32>
    %73 = arith.mulf %1, %72 : vector<1x8xf32>
    %c9 = arith.constant 9 : index
    %74 = memref.load %arg1[%c9] : memref<21xf32, #tpu.memory_space<smem>>
    %75 = vector.broadcast %74 : f32 to vector<1x8xf32>
    %76 = arith.mulf %2, %75 : vector<1x8xf32>
    %77 = arith.addf %73, %76 : vector<1x8xf32>
    %c14 = arith.constant 14 : index
    %78 = memref.load %arg1[%c14] : memref<21xf32, #tpu.memory_space<smem>>
    %79 = vector.broadcast %78 : f32 to vector<1x8xf32>
    %80 = arith.addf %77, %79 : vector<1x8xf32>
    %cst_6 = arith.constant 0.000000e+00 : f32
    %81 = vector.broadcast %cst_6 : f32 to vector<1x8xf32>
    %82 = arith.maximumf %80, %81 : vector<1x8xf32>
    %c19 = arith.constant 19 : index
    %83 = memref.load %arg1[%c19] : memref<21xf32, #tpu.memory_space<smem>>
    %84 = vector.broadcast %83 : f32 to vector<1x8xf32>
    %85 = arith.mulf %82, %84 : vector<1x8xf32>
    %86 = arith.addf %70, %85 : vector<1x8xf32>
    %c0_7 = arith.constant 0 : index
    %c0_8 = arith.constant 0 : index
    %87 = vector.load %arg3[%c0_7, %c0_8] : memref<1x8xf32, #tpu.memory_space<vmem>>, vector<1x8xf32>
    tpu.vector_store %arg3[%c0_7, %c0_8], %86 {strides = array<i32>} : memref<1x8xf32, #tpu.memory_space<vmem>>, vector<1x8xf32>,
    return
  }
  func.func @transform_0(%arg0: i32) -> i32 {
    %c0_i32 = arith.constant 0 : i32
    %c0_i32_0 = arith.constant 0 : i32
    return %c0_i32 : i32
  }
  func.func @transform_1(%arg0: i32) -> (i32, i32) {
    %c0_i32 = arith.constant 0 : i32
    %c0_i32_0 = arith.constant 0 : i32
    return %c0_i32, %arg0 : i32, i32
  }
  func.func @transform_2(%arg0: i32) -> (i32, i32) {
    %c0_i32 = arith.constant 0 : i32
    %c0_i32_0 = arith.constant 0 : i32
    return %c0_i32, %arg0 : i32, i32
  }
}

</mosaic_0001>

<llo_original>
// kernel: tpu_custom_call.1
$region0: #{tpu_custom_call.1}
  #allocation0 [shape = 'u32[]', space=smem, size = 0x4, offset = 0x4, fixed_abs, tag = 'smem constant byte address 0x4 - core index']
  #allocation1 [shape = 'u32[144,128]{1,0:T(1,128)}', space=vmem, size = 0x12000, scoped, tag = 'internal scratch']
  %s0 = inlined_call_operand.hbm [shape: f32[21], index: 0, kind: input, shape index: {}]
  %s1 = inlined_call_operand.hbm [shape: f32[2,8], index: 1, kind: input, shape index: {}]
  %s2 = inlined_call_operand.hbm [shape: f32[1,8], index: 2, kind: output, shape index: {}]
  %s3 = sld [smem:[#allocation0]]
  $region26: #{tpu_custom_call.1} parent=0
    _
  %s5 = ssub.s32 1, %s3
  %s6 = scalar_select 0, %s5, %s3
  $region1: #{tpu_custom_call.1} parent=0
    #allocation2 [shape = 'u8[512]{0}', space=smem, size = 0x200, scoped, tag = 'input window, operand 0, single buffered']
    #allocation3 [shape = 's32[1]{0}', space=sflag, size = 0x4, scoped, tag = 'scoped memory for tpu_custom_call.1']
    #allocation4 [shape = 's32[1]{0}', space=sflag, size = 0x4, scoped, tag = 'scoped memory for tpu_custom_call.1']
    #allocation5 [shape = 's32[1]{0}', space=sflag, size = 0x4, scoped, tag = 'scoped memory for tpu_custom_call.1']
    #allocation6 [shape = 'u8[1024]{0}', space=vmem, size = 0x400, scoped, tag = 'input window, operand 1, single buffered']
    #allocation7 [shape = 'u8[512]{0}', space=vmem, size = 0x400, scoped, tag = 'output window, operand 0, single buffered']
    %7 = vsyncpa [#allocation5], 0
    %8 = vsyncpa [#allocation3], 0
    %9 = vsyncpa [#allocation4], 0
    // Predicated region
    $region2: #{tpu_custom_call.1} parent=1 // pred_check
      _
    $region3: #{tpu_custom_call.1} parent=1 // pred_check_branch
      %11 = sbr.rel (0) target = $region5
    $region4: #{tpu_custom_call.1} parent=1 // pred_region
      %s13 = ssub.s32 16, 16
      %14 = vsyncadd [#allocation5], %s13
      %17 = dma.hbm_to_smem %s0, 16, [#allocation2], [#allocation5]
    $region5: #{tpu_custom_call.1} parent=1 // pred_fallthru
      _
    // Predicated region
    $region6: #{tpu_custom_call.1} parent=1 // pred_check
      _
    $region7: #{tpu_custom_call.1} parent=1 // pred_check_branch
      %19 = sbr.rel (0) target = $region9
    $region8: #{tpu_custom_call.1} parent=1 // pred_region
      %s21 = ssub.s32 32, 32
      %22 = vsyncadd [#allocation3], %s21
      %s24 = sshll.u32 [#allocation6], 4
      %s25 = int_to_ptr.vmem [resolvable:$true] %s24
      %27 = dma.hbm_to_vmem [thread:$0]  %s1, 32, %s25, [#allocation3]
    $region9: #{tpu_custom_call.1} parent=1 // pred_fallthru
      _
    // Predicated region
    $region10: #{tpu_custom_call.1} parent=1 // pred_check
      _
    $region11: #{tpu_custom_call.1} parent=1 // pred_check_branch
      %29 = sbr.rel (0) target = $region13
    $region12: #{tpu_custom_call.1} parent=1 // pred_region
      %30 = dma.done [#allocation5], 16
    $region13: #{tpu_custom_call.1} parent=1 // pred_fallthru
      _
    // Predicated region
    $region14: #{tpu_custom_call.1} parent=1 // pred_check
      _
    $region15: #{tpu_custom_call.1} parent=1 // pred_check_branch
      %32 = sbr.rel (0) target = $region17
    $region16: #{tpu_custom_call.1} parent=1 // pred_region
      %33 = dma.done [#allocation3], 32
    $region17: #{tpu_custom_call.1} parent=1 // pred_fallthru
      _
    %34 = sfence
    %v35 = vld [vmem:[#allocation6] sm:$0x3]
    %s36 = sld [smem:[#allocation2 + $0x14]]
    %v37 = vstv %s36
    %v38 = vadd.f32 %v37, 0.0
    %s39 = sld [smem:[#allocation2]]
    %v40 = vstv %s39
    %v41 = vmul.f32 %v35, %v40
    %s42 = sld [smem:[#allocation2 + $0x1]]
    %v43 = vstv %s42
    %v44 = vmul.f32 %v35, %v43
    %v46 = vrot.slane %v44, 1
    %v48 = vadd.f32 %v41, %v46
    %s49 = sld [smem:[#allocation2 + $0xa]]
    %v50 = vstv %s49
    %v51 = vadd.f32 %v48, %v50
    %v52 = vmax.f32 %v51, 0.0
    %s53 = sld [smem:[#allocation2 + $0xf]]
    %v54 = vstv %s53
    %v55 = vmul.f32 %v52, %v54
    %v56 = vadd.f32 %v38, %v55
    %s57 = sld [smem:[#allocation2 + $0x2]]
    %v58 = vstv %s57
    %v59 = vmul.f32 %v35, %v58
    %s60 = sld [smem:[#allocation2 + $0x3]]
    %v61 = vstv %s60
    %v62 = vmul.f32 %v35, %v61
    %v64 = vrot.slane %v62, 1
    %v66 = vadd.f32 %v59, %v64
    %s67 = sld [smem:[#allocation2 + $0xb]]
    %v68 = vstv %s67
    %v69 = vadd.f32 %v66, %v68
    %v70 = vmax.f32 %v69, 0.0
    %s71 = sld [smem:[#allocation2 + $0x10]]
    %v72 = vstv %s71
    %v73 = vmul.f32 %v70, %v72
    %v74 = vadd.f32 %v56, %v73
    %s75 = sld [smem:[#allocation2 + $0x4]]
    %v76 = vstv %s75
    %v77 = vmul.f32 %v35, %v76
    %s78 = sld [smem:[#allocation2 + $0x5]]
    %v79 = vstv %s78
    %v80 = vmul.f32 %v35, %v79
    %v82 = vrot.slane %v80, 1
    %v84 = vadd.f32 %v77, %v82
    %s85 = sld [smem:[#allocation2 + $0xc]]
    %v86 = vstv %s85
    %v87 = vadd.f32 %v84, %v86
    %v88 = vmax.f32 %v87, 0.0
    %s89 = sld [smem:[#allocation2 + $0x11]]
    %v90 = vstv %s89
    %v91 = vmul.f32 %v88, %v90
    %v92 = vadd.f32 %v74, %v91
    %s93 = sld [smem:[#allocation2 + $0x6]]
    %v94 = vstv %s93
    %v95 = vmul.f32 %v35, %v94
    %s96 = sld [smem:[#allocation2 + $0x7]]
    %v97 = vstv %s96
    %v98 = vmul.f32 %v35, %v97
    %v100 = vrot.slane %v98, 1
    %v102 = vadd.f32 %v95, %v100
    %s103 = sld [smem:[#allocation2 + $0xd]]
    %v104 = vstv %s103
    %v105 = vadd.f32 %v102, %v104
    %v106 = vmax.f32 %v105, 0.0
    %s107 = sld [smem:[#allocation2 + $0x12]]
    %v108 = vstv %s107
    %v109 = vmul.f32 %v106, %v108
    %v110 = vadd.f32 %v92, %v109
    %s111 = sld [smem:[#allocation2 + $0x8]]
    %v112 = vstv %s111
    %v113 = vmul.f32 %v35, %v112
    %s114 = sld [smem:[#allocation2 + $0x9]]
    %v115 = vstv %s114
    %v116 = vmul.f32 %v35, %v115
    %v118 = vrot.slane %v116, 1
    %v120 = vadd.f32 %v113, %v118
    %s121 = sld [smem:[#allocation2 + $0xe]]
    %v122 = vstv %s121
    %v123 = vadd.f32 %v120, %v122
    %v124 = vmax.f32 %v123, 0.0
    %s125 = sld [smem:[#allocation2 + $0x13]]
    %v126 = vstv %s125
    %v127 = vmul.f32 %v124, %v126
    %v128 = vadd.f32 %v110, %v127
    %vm129 = vcmask 57344
    %130 = vst.msk [vmem:[#allocation7] sm:$0x1] %vm129, %v128
    // Predicated region
    $region18: #{tpu_custom_call.1} parent=1 // pred_check
      _
    $region19: #{tpu_custom_call.1} parent=1 // pred_check_branch
      %132 = sbr.rel (0) target = $region21
    $region20: #{tpu_custom_call.1} parent=1 // pred_region
      %s134 = ssub.s32 16, 16
      %135 = vsyncadd [#allocation4], %s134
      %s137 = sshll.u32 [#allocation7], 4
      %s138 = int_to_ptr.vmem [resolvable:$true] %s137
      %140 = dma.vmem_to_hbm [thread:$0]  %s138, 16, %s2, [#allocation4]
    $region21: #{tpu_custom_call.1} parent=1 // pred_fallthru
      _
    // Predicated region
    $region22: #{tpu_custom_call.1} parent=1 // pred_check
      _
    $region23: #{tpu_custom_call.1} parent=1 // pred_check_branch
      %142 = sbr.rel (0) target = $region25
    $region24: #{tpu_custom_call.1} parent=1 // pred_region
      %143 = dma.done [#allocation4], 16
    $region25: #{tpu_custom_call.1} parent=1 // pred_fallthru
      _
    %144 = vsyncpa [#allocation3], 1
    %145 = vsyncpa [#allocation4], 1
    %146 = vsyncpa [#allocation5], 1

</llo_original>
